<compile_context>
chip_gen: v7x
topology: tpu7x:2x2x1
jax: 0.10.0
libtpu: 0.0.40
codegen_flags: <defaults>
</compile_context>

<pallas_src>
import functools

import jax
import jax.numpy as jnp
from jax.experimental import pallas as pl
from jax.experimental.pallas import tpu as pltpu

BN_EPS = 1e-5
C_IN = 16            # conv input channels
P = 9                # 3*3 spatial positions
K = C_IN * P         # flattened per-sample feature size (144)


def _round_up(x, m):
    return (x + m - 1) // m * m


# ----------------------------------------------------------------------------------------
# Kernel 1: 1x1 conv (NT MXU matmul, batch -> lanes) + per-tile BatchNorm statistics.
# ----------------------------------------------------------------------------------------
def _conv_stats_kernel(x_ref, w2dt_ref, convt_ref, stats_ref):
    # (9, 144) x (TB, 144)^T -> (9, TB): contraction over both minor dims (flash-attn style
    # NT matmul), so the result already has the batch on the lane axis.
    convt = jax.lax.dot_general(
        w2dt_ref[...], x_ref[...],
        dimension_numbers=(((1,), (1,)), ((), ())),
        preferred_element_type=jnp.float32)
    # Per-tile partial batch-norm statistics (zero-padded batch rows contribute exactly 0
    # because there is no conv bias inside the kernel).  Reduced in the wrapper.
    stats_ref[0, :, 0:1] = jnp.sum(convt, keepdims=True)
    stats_ref[0, :, 1:2] = jnp.sum(convt * convt, keepdims=True)
    # Lane-dense store of the intermediate.
    convt_ref[...] = convt                                     # (9, TB)


# ----------------------------------------------------------------------------------------
# Kernel 2: BN affine + ReLU + fc1 + ReLU + fc2 + tanh, batch on lanes throughout.
# ----------------------------------------------------------------------------------------
def _head_kernel(convt_ref, w1b1_ref, sc_ref, o_ref):
    scale = sc_ref[0]                  # gamma / sqrt(var + eps)
    shift = sc_ref[1]                  # beta - mean * scale
    y = jnp.maximum(convt_ref[...] * scale + shift, 0.0)          # (9, TB): BN + ReLU
    w1 = w1b1_ref[:, 0:P]                                          # (3, 9)
    b1 = w1b1_ref[:, P:P + 1]                                      # (3, 1)
    h = jnp.dot(w1, y, preferred_element_type=jnp.float32) + b1    # (3, TB)
    h = jnp.maximum(h, 0.0)
    # fc2 (3 -> 1) as VPU broadcast multiply-adds (too skinny for the MXU).
    out = (sc_ref[2] * h[0:1, :] + sc_ref[3] * h[1:2, :]
           + sc_ref[4] * h[2:3, :] + sc_ref[5])                    # (1, TB)
    o_ref[...] = jnp.tanh(out)                                     # lane-dense store


# ----------------------------------------------------------------------------------------
# Parameters
# ----------------------------------------------------------------------------------------
def init_params(key):
    k = jax.random.split(key, 8)
    return {
        "conv_w": 0.3 * jax.random.normal(k[0], (1, C_IN, 1, 1), jnp.float32),
        "conv_b": 0.1 * jax.random.normal(k[1], (1,), jnp.float32),
        "bn_gamma": 1.0 + 0.1 * jax.random.normal(k[2], (1,), jnp.float32),
        "bn_beta": 0.1 * jax.random.normal(k[3], (1,), jnp.float32),
        "fc1_w": 0.3 * jax.random.normal(k[4], (3, P), jnp.float32),   # (out, in) as in torch
        "fc1_b": 0.1 * jax.random.normal(k[5], (3,), jnp.float32),
        "fc2_w": 0.3 * jax.random.normal(k[6], (1, 3), jnp.float32),
        "fc2_b": 0.1 * jax.random.normal(k[7], (1,), jnp.float32),
    }


def prepare_params(params):
    """One-time packing of the tiny weights into kernel-friendly layouts (hoisted out of
    the per-call path).  The conv bias is intentionally dropped: it is exactly cancelled
    by the BatchNorm mean-centering that immediately follows, so it cannot affect the
    forward output."""
    conv_w = params["conv_w"].reshape(C_IN)
    eye_p = jnp.eye(P, dtype=jnp.float32)
    # w2d[c*P + p, q] = conv_w[c] * (p == q): absorbs the NCHW -> spatial-major permutation
    # into the tiny weight so x can be passed as a free contiguous reshape of NCHW.
    w2d = (conv_w[:, None, None] * eye_p[None, :, :]).reshape(K, P)
    packed = dict(params)
    packed["conv_w2dt"] = jnp.transpose(w2d)                               # (9, 144)
    packed["fc1_wb"] = jnp.concatenate(
        [params["fc1_w"], params["fc1_b"].reshape(3, 1)], axis=1)          # (3, 10)
    return packed


# ----------------------------------------------------------------------------------------
# Forward
# ----------------------------------------------------------------------------------------
def value_head_forward(x_nchw, params, *, block_b=None):
    B, C, H, W = x_nchw.shape
    assert (C, H, W) == (C_IN, 3, 3)

    # Free contiguous reshape (no transpose / extra HBM pass over the activation).
    x_flat = x_nchw.reshape(B, K)

    if block_b is None:
        # Lane-dense batch tiles; default sized to fit the scoped-VMEM defaults of
        # v5e/v6e/v7x with double buffering (~4.3 MiB total at 2048).
        block_b = min(2048, _round_up(B, 128))
    assert block_b % 128 == 0
    tb = block_b
    bp = _round_up(B, tb)
    if bp != B:
        # TODO(synk): this zero-pad is one extra copy of x; for large batches pick
        # B % block_b == 0 to avoid it.
        x_flat = jnp.pad(x_flat, ((0, bp - B), (0, 0)))
    g = bp // tb

    convt, stats = pl.pallas_call(
        _conv_stats_kernel,
        grid=(g,),
        in_specs=[
            pl.BlockSpec((tb, K), lambda i: (i, 0)),
            pl.BlockSpec((P, K), lambda i: (0, 0)),
        ],
        out_specs=(
            pl.BlockSpec((P, tb), lambda i: (0, i)),
            pl.BlockSpec((1, 1, 2), lambda i: (i, 0, 0)),
        ),
        out_shape=(
            jax.ShapeDtypeStruct((P, bp), jnp.float32),
            jax.ShapeDtypeStruct((g, 1, 2), jnp.float32),
        ),
        compiler_params=pltpu.CompilerParams(dimension_semantics=("parallel",)),
    )(x_flat, params["conv_w2dt"])

    # Fold BatchNorm (training-mode batch statistics) + affine into one scale/shift pair.
    n = jnp.float32(B * P)
    tot = jnp.sum(stats.reshape(g, 2), axis=0)
    mean = tot[0] / n
    var = tot[1] / n - mean * mean                 # biased variance, as torch BN uses
    scale = params["bn_gamma"][0] * jax.lax.rsqrt(var + BN_EPS)
    shift = params["bn_beta"][0] - mean * scale
    # TODO(synk): running_mean / running_var buffer updates (a training-mode side effect)
    # are not reproduced; they do not affect the forward output.

    scalars = jnp.stack([scale, shift,
                         params["fc2_w"][0, 0], params["fc2_w"][0, 1],
                         params["fc2_w"][0, 2], params["fc2_b"][0]])

    out = pl.pallas_call(
        _head_kernel,
        grid=(g,),
        in_specs=[
            pl.BlockSpec((P, tb), lambda i: (0, i)),
            pl.BlockSpec((3, P + 1), lambda i: (0, 0)),
            pl.BlockSpec(memory_space=pltpu.MemorySpace.SMEM),
        ],
        out_specs=pl.BlockSpec((1, tb), lambda i: (0, i)),
        out_shape=jax.ShapeDtypeStruct((1, bp), jnp.float32),
        compiler_params=pltpu.CompilerParams(dimension_semantics=("parallel",)),
    )(convt, params["fc1_wb"], scalars)

    return out[0, :B].reshape(B, 1)


# ----------------------------------------------------------------------------------------
# Plain-JAX reference mirroring the PyTorch forward (training-mode BatchNorm).
# ----------------------------------------------------------------------------------------
def value_head_ref(x_nchw, params):
    conv = jnp.einsum("bchw,c->bhw", x_nchw, params["conv_w"].reshape(C_IN))
    conv = conv + params["conv_b"][0]                          # (B, 3, 3)
    mean = conv.mean()
    var = ((conv - mean) ** 2).mean()                          # biased variance
    y = (conv - mean) / jnp.sqrt(var + BN_EPS)
    y = y * params["bn_gamma"][0] + params["bn_beta"][0]
    y = jnp.maximum(y, 0.0).reshape(-1, P)
    h = jnp.maximum(y @ params["fc1_w"].T + params["fc1_b"], 0.0)
    return jnp.tanh(h @ params["fc2_w"].T + params["fc2_b"])


if __name__ == "__main__":
    key = jax.random.PRNGKey(0)
    kx, kp = jax.random.split(key)

    B = 1000                                 # not a tile multiple -> exercises the padding path
    x = jax.random.normal(kx, (B, C_IN, 3, 3), jnp.float32)   # NCHW, like the torch module
    params = prepare_params(init_params(kp))

    fwd = jax.jit(functools.partial(value_head_forward, block_b=256))
    out = jax.block_until_ready(fwd(x, params))
    ref = value_head_ref(x, params)

    assert out.shape == (B, 1)
    assert jnp.allclose(out, ref, atol=1e-4, rtol=1e-4), (out[:4], ref[:4])
    print("KERNEL_OK")
</pallas_src>

<mosaic_0001>
module attributes {stable_mosaic.version = 11 : i64} {
  func.func @_conv_stats_kernel(%arg0: i32, %arg1: memref<256x144xf32, #tpu.memory_space<vmem>>, %arg2: memref<9x144xf32, #tpu.memory_space<vmem>>, %arg3: memref<9x256xf32, #tpu.memory_space<vmem>>, %arg4: memref<1x1x2xf32, #tpu.memory_space<vmem>>) attributes {dimension_semantics = [#tpu.dimension_semantics<parallel>], iteration_bounds = array<i64: 4>, scalar_prefetch = 0 : i64, scratch_operands = 0 : i64, tpu.core_type = #tpu.core_type<tc>, window_params = [{transform_indices = @transform_0, window_bounds = array<i64: 256, 144>}, {pipeline_mode = #tpu.pipeline_mode<synchronous>, transform_indices = @transform_1, window_bounds = array<i64: 9, 144>}, {transform_indices = @transform_2, window_bounds = array<i64: 9, 256>}, {transform_indices = @transform_3, window_bounds = array<i64: 1, 1, 2>}]} {
    %c0 = arith.constant 0 : index
    %c0_0 = arith.constant 0 : index
    %0 = vector.load %arg2[%c0, %c0_0] : memref<9x144xf32, #tpu.memory_space<vmem>>, vector<9x144xf32>
    %c0_1 = arith.constant 0 : index
    %c0_2 = arith.constant 0 : index
    %1 = vector.load %arg1[%c0_1, %c0_2] : memref<256x144xf32, #tpu.memory_space<vmem>>, vector<256x144xf32>
    %cst = arith.constant dense<0.000000e+00> : vector<9x256xf32>
    %2 = tpu.matmul %0, %1, %cst {dimension_numbers = #tpu.dot_dimension_numbers<[1], [1], [0], [0], [0, 0, 1, 0], [], []>} : vector<9x144xf32>, vector<256x144xf32>, vector<9x256xf32> -> vector<9x256xf32>
    %3 = vector.shape_cast %2 : vector<9x256xf32> to vector<1x9x256xf32>
    %cst_3 = arith.constant dense<0.000000e+00> : vector<1xf32>
    %4 = vector.multi_reduction <add>, %3, %cst_3 [1, 2] : vector<1x9x256xf32> to vector<1xf32>
    %5 = vector.shape_cast %4 : vector<1xf32> to vector<1x1x1xf32>
    %6 = vector.extract %5[0, 0, 0] : f32 from vector<1x1x1xf32>
    %7 = vector.broadcast %6 : f32 to vector<1x1xf32>
    %c0_4 = arith.constant 0 : index
    %c0_5 = arith.constant 0 : index
    %c0_6 = arith.constant 0 : index
    %8 = vector.load %arg4[%c0_4, %c0_5, %c0_6] : memref<1x1x2xf32, #tpu.memory_space<vmem>>, vector<1x1x1xf32>
    %9 = vector.shape_cast %8 : vector<1x1x1xf32> to vector<1x1xf32>
    %10 = vector.shape_cast %7 : vector<1x1xf32> to vector<1x1x1xf32>
    tpu.vector_store %arg4[%c0_4, %c0_5, %c0_6], %10 {strides = array<i32>} : memref<1x1x2xf32, #tpu.memory_space<vmem>>, vector<1x1x1xf32>,
    %11 = arith.mulf %2, %2 : vector<9x256xf32>
    %12 = vector.shape_cast %11 : vector<9x256xf32> to vector<1x9x256xf32>
    %cst_7 = arith.constant dense<0.000000e+00> : vector<1xf32>
    %13 = vector.multi_reduction <add>, %12, %cst_7 [1, 2] : vector<1x9x256xf32> to vector<1xf32>
    %14 = vector.shape_cast %13 : vector<1xf32> to vector<1x1x1xf32>
    %15 = vector.extract %14[0, 0, 0] : f32 from vector<1x1x1xf32>
    %16 = vector.broadcast %15 : f32 to vector<1x1xf32>
    %c0_8 = arith.constant 0 : index
    %c0_9 = arith.constant 0 : index
    %c1 = arith.constant 1 : index
    %17 = vector.load %arg4[%c0_8, %c0_9, %c1] : memref<1x1x2xf32, #tpu.memory_space<vmem>>, vector<1x1x1xf32>
    %18 = vector.shape_cast %17 : vector<1x1x1xf32> to vector<1x1xf32>
    %19 = vector.shape_cast %16 : vector<1x1xf32> to vector<1x1x1xf32>
    tpu.vector_store %arg4[%c0_8, %c0_9, %c1], %19 {strides = array<i32>} : memref<1x1x2xf32, #tpu.memory_space<vmem>>, vector<1x1x1xf32>,
    %c0_10 = arith.constant 0 : index
    %c0_11 = arith.constant 0 : index
    %20 = vector.load %arg3[%c0_10, %c0_11] : memref<9x256xf32, #tpu.memory_space<vmem>>, vector<9x256xf32>
    tpu.vector_store %arg3[%c0_10, %c0_11], %2 {strides = array<i32>} : memref<9x256xf32, #tpu.memory_space<vmem>>, vector<9x256xf32>,
    return
  }
  func.func @transform_0(%arg0: i32) -> (i32, i32) {
    %c0_i32 = arith.constant 0 : i32
    %c0_i32_0 = arith.constant 0 : i32
    return %arg0, %c0_i32 : i32, i32
  }
  func.func @transform_1(%arg0: i32) -> (i32, i32) {
    %c0_i32 = arith.constant 0 : i32
    %c0_i32_0 = arith.constant 0 : i32
    %c0_i32_1 = arith.constant 0 : i32
    return %c0_i32, %c0_i32_0 : i32, i32
  }
  func.func @transform_2(%arg0: i32) -> (i32, i32) {
    %c0_i32 = arith.constant 0 : i32
    %c0_i32_0 = arith.constant 0 : i32
    return %c0_i32, %arg0 : i32, i32
  }
  func.func @transform_3(%arg0: i32) -> (i32, i32, i32) {
    %c0_i32 = arith.constant 0 : i32
    %c0_i32_0 = arith.constant 0 : i32
    %c0_i32_1 = arith.constant 0 : i32
    return %arg0, %c0_i32, %c0_i32_0 : i32, i32, i32
  }
}

module attributes {stable_mosaic.version = 11 : i64} {
  func.func @_head_kernel(%arg0: i32, %arg1: memref<9x256xf32, #tpu.memory_space<vmem>>, %arg2: memref<3x10xf32, #tpu.memory_space<vmem>>, %arg3: memref<6xf32, #tpu.memory_space<smem>>, %arg4: memref<1x256xf32, #tpu.memory_space<vmem>>) attributes {dimension_semantics = [#tpu.dimension_semantics<parallel>], iteration_bounds = array<i64: 4>, scalar_prefetch = 0 : i64, scratch_operands = 0 : i64, tpu.core_type = #tpu.core_type<tc>, window_params = [{transform_indices = @transform_0, window_bounds = array<i64: 9, 256>}, {pipeline_mode = #tpu.pipeline_mode<synchronous>, transform_indices = @transform_1, window_bounds = array<i64: 3, 10>}, {transform_indices = @transform_2, window_bounds = array<i64: 6>}, {transform_indices = @transform_3, window_bounds = array<i64: 1, 256>}]} {
    %c0 = arith.constant 0 : index
    %0 = memref.load %arg3[%c0] : memref<6xf32, #tpu.memory_space<smem>>
    %c1 = arith.constant 1 : index
    %1 = memref.load %arg3[%c1] : memref<6xf32, #tpu.memory_space<smem>>
    %c0_0 = arith.constant 0 : index
    %c0_1 = arith.constant 0 : index
    %2 = vector.load %arg1[%c0_0, %c0_1] : memref<9x256xf32, #tpu.memory_space<vmem>>, vector<9x256xf32>
    %3 = vector.broadcast %0 : f32 to vector<9x256xf32>
    %4 = arith.mulf %2, %3 : vector<9x256xf32>
    %5 = vector.broadcast %1 : f32 to vector<9x256xf32>
    %6 = arith.addf %4, %5 : vector<9x256xf32>
    %cst = arith.constant 0.000000e+00 : f32
    %7 = vector.broadcast %cst : f32 to vector<9x256xf32>
    %8 = arith.maximumf %6, %7 : vector<9x256xf32>
    %c0_2 = arith.constant 0 : index
    %c0_3 = arith.constant 0 : index
    %9 = vector.load %arg2[%c0_2, %c0_3] : memref<3x10xf32, #tpu.memory_space<vmem>>, vector<3x9xf32>
    %c0_4 = arith.constant 0 : index
    %c9 = arith.constant 9 : index
    %10 = vector.load %arg2[%c0_4, %c9] : memref<3x10xf32, #tpu.memory_space<vmem>>, vector<3x1xf32>
    %cst_5 = arith.constant dense<0.000000e+00> : vector<3x256xf32>
    %11 = tpu.matmul %9, %8, %cst_5 {dimension_numbers = #tpu.dot_dimension_numbers<[1], [0], [0], [1], [0, 0, 1, 1], [], []>} : vector<3x9xf32>, vector<9x256xf32>, vector<3x256xf32> -> vector<3x256xf32>
    %12 = vector.broadcast %10 : vector<3x1xf32> to vector<3x256xf32>
    %13 = arith.addf %11, %12 : vector<3x256xf32>
    %cst_6 = arith.constant 0.000000e+00 : f32
    %14 = vector.broadcast %cst_6 : f32 to vector<3x256xf32>
    %15 = arith.maximumf %13, %14 : vector<3x256xf32>
    %c2 = arith.constant 2 : index
    %16 = memref.load %arg3[%c2] : memref<6xf32, #tpu.memory_space<smem>>
    %17 = vector.extract_strided_slice %15 {offsets = [0, 0], sizes = [1, 256], strides = [1, 1]} : vector<3x256xf32> to vector<1x256xf32>
    %18 = vector.broadcast %16 : f32 to vector<1x256xf32>
    %19 = arith.mulf %18, %17 : vector<1x256xf32>
    %c3 = arith.constant 3 : index
    %20 = memref.load %arg3[%c3] : memref<6xf32, #tpu.memory_space<smem>>
    %21 = vector.extract_strided_slice %15 {offsets = [1, 0], sizes = [1, 256], strides = [1, 1]} : vector<3x256xf32> to vector<1x256xf32>
    %22 = vector.broadcast %20 : f32 to vector<1x256xf32>
    %23 = arith.mulf %22, %21 : vector<1x256xf32>
    %24 = arith.addf %19, %23 : vector<1x256xf32>
    %c4 = arith.constant 4 : index
    %25 = memref.load %arg3[%c4] : memref<6xf32, #tpu.memory_space<smem>>
    %26 = vector.extract_strided_slice %15 {offsets = [2, 0], sizes = [1, 256], strides = [1, 1]} : vector<3x256xf32> to vector<1x256xf32>
    %27 = vector.broadcast %25 : f32 to vector<1x256xf32>
    %28 = arith.mulf %27, %26 : vector<1x256xf32>
    %29 = arith.addf %24, %28 : vector<1x256xf32>
    %c5 = arith.constant 5 : index
    %30 = memref.load %arg3[%c5] : memref<6xf32, #tpu.memory_space<smem>>
    %31 = vector.broadcast %30 : f32 to vector<1x256xf32>
    %32 = arith.addf %29, %31 : vector<1x256xf32>
    %33 = math.tanh %32 : vector<1x256xf32>
    %c0_7 = arith.constant 0 : index
    %c0_8 = arith.constant 0 : index
    %34 = vector.load %arg4[%c0_7, %c0_8] : memref<1x256xf32, #tpu.memory_space<vmem>>, vector<1x256xf32>
    tpu.vector_store %arg4[%c0_7, %c0_8], %33 {strides = array<i32>} : memref<1x256xf32, #tpu.memory_space<vmem>>, vector<1x256xf32>,
    return
  }
  func.func @transform_0(%arg0: i32) -> (i32, i32) {
    %c0_i32 = arith.constant 0 : i32
    %c0_i32_0 = arith.constant 0 : i32
    return %c0_i32, %arg0 : i32, i32
  }
  func.func @transform_1(%arg0: i32) -> (i32, i32) {
    %c0_i32 = arith.constant 0 : i32
    %c0_i32_0 = arith.constant 0 : i32
    %c0_i32_1 = arith.constant 0 : i32
    return %c0_i32, %c0_i32_0 : i32, i32
  }
  func.func @transform_2(%arg0: i32) -> i32 {
    %c0_i32 = arith.constant 0 : i32
    %c0_i32_0 = arith.constant 0 : i32
    return %c0_i32 : i32
  }
  func.func @transform_3(%arg0: i32) -> (i32, i32) {
    %c0_i32 = arith.constant 0 : i32
    %c0_i32_0 = arith.constant 0 : i32
    return %c0_i32, %arg0 : i32, i32
  }
}

</mosaic_0001>

<llo_original>
// kernel: value_head_forward.3
$region0: #{value_head_forward.3}
  #allocation0 [shape = 'u32[]', space=smem, size = 0x4, offset = 0x4, fixed_abs, tag = 'smem constant byte address 0x4 - core index']
  #allocation1 [shape = 'u32[144,128]{1,0:T(1,128)}', space=vmem, size = 0x12000, scoped, tag = 'internal scratch']
  %s0 = inlined_call_operand.vmem [shape: f32[9,1024], index: 0, kind: input, shape index: {}]
  %s1 = inlined_call_operand.vmem [shape: f32[3,10], index: 1, kind: input, shape index: {}]
  %s2 = inlined_call_operand.vmem [shape: f32[6], index: 2, kind: input, shape index: {}]
  %s3 = inlined_call_operand.vmem [shape: f32[1,1024], index: 3, kind: output, shape index: {}]
  %s4 = sld [smem:[#allocation0]]
  $region72: #{value_head_forward.3} parent=0
    _
  %s6 = ssub.s32 1, %s4
  %s7 = scalar_select 0, %s6, %s4
  $region1: #{value_head_forward.3} parent=0
    #allocation2 [shape = 'u8[32768]{0}', space=vmem, size = 0x8000, scoped, tag = 'input window, operand 0']
    #allocation3 [shape = 'u8[512]{0}', space=smem, size = 0x200, scoped, tag = 'input window, operand 2, single buffered']
    #allocation4 [shape = 's32[2]{0}', space=sflag, size = 0x8, scoped, tag = 'scoped memory for value_head_forward.3']
    %8 = vsyncpa [#allocation4], 0
    loop: start=0, step=1, limit=6
    $region2: #{value_head_forward.3} parent=1 // loop_pre_header
      _
    $region3: #{value_head_forward.3} parent=1 // loop_header
      %s10 = sphi 0, %s14
      %p11 = scmp.ge.s32.totalorder %s10, 6
      %s20 = sphi 0, %s22
      %s23 = sphi 0, %s20
      %s24 = sphi 0, %s23
      %s40 = sphi 0, %s24
      %s44 = sphi 0, %s44
      %s46 = sphi 0, %s44
      %s47 = sphi 0, %s46
      %s61 = sphi 0, %s47
      %s65 = sphi 0, %s65
      %s67 = sphi 0, %s65
      %s68 = sphi 0, %s67
      %s82 = sphi 0, %s68
      %s88 = sphi 0, %s90
      %s91 = sphi 0, %s88
      %s92 = sphi 0, %s91
      %s108 = sphi 0, %s92
    $region4: #{value_head_forward.3} parent=1 // loop_header_branch
      %13 = sbr.rel (%p11) target = $region8
    $region5: #{value_head_forward.3} parent=1 // loop_body
      %s15 = ssub.s32 %s10, 1
      %s16 = ssub.s32 %s10, 2
      %s17 = sadd.s32 %s10, 1
      %s18 = ssub.s32 %s10, %s17
      %p19 = scmp.eq.s32.totalorder %s18, 0
      %s21 = sadd.s32 %s20, 1
      %s22 = scalar_select %p19, %s20, %s21
      %p25 = pneg %p19
      %p26 = scmp.eq.s32.totalorder %s10, 3
      %p27 = por %p25, %p26
      %p28 = scmp.ne.s32.totalorder %s20, %s23
      %p29 = scmp.eq.s32.totalorder %s10, 0
      %p30 = por %p28, %p29
      %p31 = scmp.ne.s32.totalorder %s20, %s23
      %p32 = scmp.eq.s32.totalorder %s15, 3
      %p33 = por %p31, %p32
      %p34 = scmp.ne.s32.totalorder %s23, %s24
      %p35 = scmp.eq.s32.totalorder %s15, 0
      %p36 = por %p34, %p35
      %p37 = scmp.ne.s32.totalorder %s23, %s24
      %p38 = scmp.eq.s32.totalorder %s16, 3
      %p39 = por %p37, %p38
      %p41 = scmp.ne.s32.totalorder %s24, %s40
      %p42 = scmp.eq.s32.totalorder %s16, 0
      %p43 = por %p41, %p42
      %s45 = sadd.s32 %s44, 1
      %p48 = scmp.eq.s32.totalorder %s10, 3
      %p49 = scmp.ne.s32.totalorder %s44, %s46
      %p50 = scmp.eq.s32.totalorder %s10, 0
      %p51 = por %p49, %p50
      %p52 = scmp.ne.s32.totalorder %s44, %s46
      %p53 = scmp.eq.s32.totalorder %s15, 3
      %p54 = por %p52, %p53
      %p55 = scmp.ne.s32.totalorder %s46, %s47
      %p56 = scmp.eq.s32.totalorder %s15, 0
      %p57 = por %p55, %p56
      %p58 = scmp.ne.s32.totalorder %s46, %s47
      %p59 = scmp.eq.s32.totalorder %s16, 3
      %p60 = por %p58, %p59
      %p62 = scmp.ne.s32.totalorder %s47, %s61
      %p63 = scmp.eq.s32.totalorder %s16, 0
      %p64 = por %p62, %p63
      %s66 = sadd.s32 %s65, 1
      %p69 = scmp.eq.s32.totalorder %s10, 3
      %p70 = scmp.ne.s32.totalorder %s65, %s67
      %p71 = scmp.eq.s32.totalorder %s10, 0
      %p72 = por %p70, %p71
      %p73 = scmp.ne.s32.totalorder %s65, %s67
      %p74 = scmp.eq.s32.totalorder %s15, 3
      %p75 = por %p73, %p74
      %p76 = scmp.ne.s32.totalorder %s67, %s68
      %p77 = scmp.eq.s32.totalorder %s15, 0
      %p78 = por %p76, %p77
      %p79 = scmp.ne.s32.totalorder %s67, %s68
      %p80 = scmp.eq.s32.totalorder %s16, 3
      %p81 = por %p79, %p80
      %p83 = scmp.ne.s32.totalorder %s68, %s82
      %p84 = scmp.eq.s32.totalorder %s16, 0
      %p85 = por %p83, %p84
      %s86 = ssub.s32 %s10, %s17
      %p87 = scmp.eq.s32.totalorder %s86, 0
      %s89 = sadd.s32 %s88, 1
      %s90 = scalar_select %p87, %s88, %s89
      %p93 = pneg %p87
      %p94 = scmp.eq.s32.totalorder %s10, 3
      %p95 = por %p93, %p94
      %p96 = scmp.ne.s32.totalorder %s88, %s91
      %p97 = scmp.eq.s32.totalorder %s10, 0
      %p98 = por %p96, %p97
      %p99 = scmp.ne.s32.totalorder %s88, %s91
      %p100 = scmp.eq.s32.totalorder %s15, 3
      %p101 = por %p99, %p100
      %p102 = scmp.ne.s32.totalorder %s91, %s92
      %p103 = scmp.eq.s32.totalorder %s15, 0
      %p104 = por %p102, %p103
      %p105 = scmp.ne.s32.totalorder %s91, %s92
      %p106 = scmp.eq.s32.totalorder %s16, 3
      %p107 = por %p105, %p106
      %p109 = scmp.ne.s32.totalorder %s92, %s108
      %p110 = scmp.eq.s32.totalorder %s16, 0
      %p111 = por %p109, %p110
      %p112 = scmp.le.s32.totalorder 1, %s10
      %p113 = scmp.lt.s32.totalorder %s10, 5
      %p114 = pnand %p112, %p113
      %p115 = pneg %p114
      // Predicated region
      $region9: #{value_head_forward.3} parent=5 // pred_check
        _
      $region10: #{value_head_forward.3} parent=5 // pred_check_branch
        %117 = sbr.rel (%p114) target = $region12
      $region11: #{value_head_forward.3} parent=5 // pred_region
        %s118 = ssub.s32 %s10, 1
        // Predicated region
        $region13: #{value_head_forward.3} parent=11 // pred_check
          %p119 = pneg %p57
        $region14: #{value_head_forward.3} parent=11 // pred_check_branch
          %121 = sbr.rel (%p119) target = $region16
        $region15: #{value_head_forward.3} parent=11 // pred_region
          _
        $region16: #{value_head_forward.3} parent=11 // pred_fallthru
          _
        // Predicated region
        $region17: #{value_head_forward.3} parent=11 // pred_check
          %p122 = pneg %p78
        $region18: #{value_head_forward.3} parent=11 // pred_check_branch
          %124 = sbr.rel (%p122) target = $region20
        $region19: #{value_head_forward.3} parent=11 // pred_region
          %s126 = ssub.s32 16, 16
          %127 = vsyncadd [#allocation4], %s126
          %s129 = sshll.u32 %s2, 4
          %s130 = int_to_ptr.vmem [resolvable:$true] %s129
          %132 = dma.vmem_to_smem %s130, 16, [#allocation3], [#allocation4]
        $region20: #{value_head_forward.3} parent=11 // pred_fallthru
          _
      $region12: #{value_head_forward.3} parent=5 // pred_fallthru
        _
      %p133 = scmp.lt.s32.totalorder %s10, 4
      // Predicated region
      $region21: #{value_head_forward.3} parent=5 // pred_check
        %p134 = pneg %p133
      $region22: #{value_head_forward.3} parent=5 // pred_check_branch
        %136 = sbr.rel (%p134) target = $region24
      $region23: #{value_head_forward.3} parent=5 // pred_region
        // Predicated region
        $region25: #{value_head_forward.3} parent=23 // pred_check
          %p137 = pneg %p30
        $region26: #{value_head_forward.3} parent=23 // pred_check_branch
          %139 = sbr.rel (%p137) target = $region28
        $region27: #{value_head_forward.3} parent=23 // pred_region
          %s140 = sand.u32 %s20, 1
          %s141 = sand.u32 %s20, 1
          %s142 = smul.addr %s141, 32
          %s143 = scalar_lea.vmem [#allocation2], %s142
          %s144 = smul.u32 2, %s10
          %s145 = smul.addr %s144, 8
          %s146 = scalar_lea.vmem %s0, %s145
          // Predicated region
          $region29: #{value_head_forward.3} parent=27 // pred_check
            _
          $region30: #{value_head_forward.3} parent=27 // pred_check_branch
            %148 = sbr.rel (0) target = $region32
          $region31: #{value_head_forward.3} parent=27 // pred_region
            // Predicated region
            $region33: #{value_head_forward.3} parent=31 // pred_check
              _
            $region34: #{value_head_forward.3} parent=31 // pred_check_branch
              %150 = sbr.rel (0) target = $region36
            $region35: #{value_head_forward.3} parent=31 // pred_region
              loop: start=0, step=1, limit=1
              $region37: #{value_head_forward.3} parent=35 // loop_pre_header
                _
              $region38: #{value_head_forward.3} parent=35 // loop_header
                %s152 = sphi 0, %s156
                %p153 = scmp.ge.s32.totalorder %s152, 1
                %s157 = sphi %s146, %s146
                %s158 = sphi %s143, %s143
              $region39: #{value_head_forward.3} parent=35 // loop_header_branch
                %155 = sbr.rel (%p153) target = $region43
              $region40: #{value_head_forward.3} parent=35 // loop_body
                %v159 = vld [vmem:[%s157] sm:$0xff]
                %160 = vst [vmem:[%s158] sm:$0xff] %v159
                %v161 = vld [vmem:[%s157 + $0x8] sm:$0xff]
                %162 = vst [vmem:[%s158 + $0x8] sm:$0xff] %v161
                %v163 = vld [vmem:[%s157 + $0x40] sm:$0xff]
                %164 = vst [vmem:[%s158 + $0x10] sm:$0xff] %v163
                %v165 = vld [vmem:[%s157 + $0x48] sm:$0xff]
                %166 = vst [vmem:[%s158 + $0x18] sm:$0xff] %v165
              $region41: #{value_head_forward.3} parent=35 // loop_footer
                %s156 = sadd.s32 1, %s152
              $region42: #{value_head_forward.3} parent=35 // loop_footer_branch
                %151 = sbr.rel target = $region38
              $region43: #{value_head_forward.3} parent=35 // loop_exit
                _
            $region36: #{value_head_forward.3} parent=31 // pred_fallthru
              _
            // Predicated region
            $region44: #{value_head_forward.3} parent=31 // pred_check
              _
            $region45: #{value_head_forward.3} parent=31 // pred_check_branch
              %168 = sbr.rel target = $region47
            $region46: #{value_head_forward.3} parent=31 // pred_region
              _
            $region47: #{value_head_forward.3} parent=31 // pred_fallthru
              _
          $region32: #{value_head_forward.3} parent=27 // pred_fallthru
            _
          %169 = vnop
        $region28: #{value_head_forward.3} parent=23 // pred_fallthru
          _
      $region24: #{value_head_forward.3} parent=5 // pred_fallthru
        _
      %p170 = scmp.le.s32.totalorder 1, %s10
      %p171 = scmp.lt.s32.totalorder %s10, 5
      %p172 = pnand %p170, %p171
      %p173 = pneg %p172
      // Predicated region
      $region48: #{value_head_forward.3} parent=5 // pred_check
        _
      $region49: #{value_head_forward.3} parent=5 // pred_check_branch
        %175 = sbr.rel (%p172) target = $region51
      $region50: #{value_head_forward.3} parent=5 // pred_region
        %s176 = ssub.s32 %s10, 1
        %s177 = sand.u32 %s23, 1
        %s178 = sand.u32 %s23, 1
        %s179 = smul.addr %s178, 32
        %s180 = scalar_lea.vmem [#allocation2], %s179
        // Predicated region
        $region52: #{value_head_forward.3} parent=50 // pred_check
          %p181 = pneg %p36
        $region53: #{value_head_forward.3} parent=50 // pred_check_branch
          %183 = sbr.rel (%p181) target = $region55
        $region54: #{value_head_forward.3} parent=50 // pred_region
          _
        $region55: #{value_head_forward.3} parent=50 // pred_fallthru
          _
        // Predicated region
        $region56: #{value_head_forward.3} parent=50 // pred_check
          %p184 = pneg %p78
        $region57: #{value_head_forward.3} parent=50 // pred_check_branch
          %186 = sbr.rel (%p184) target = $region59
        $region58: #{value_head_forward.3} parent=50 // pred_region
          %187 = dma.done [#allocation4], 16
        $region59: #{value_head_forward.3} parent=50 // pred_fallthru
          _
        %188 = sfence
        %s189 = sand.u32 %s23, 1
        %s190 = sand.u32 %s23, 1
        %s191 = smul.addr %s190, 32
        %s192 = scalar_lea.vmem [#allocation2], %s191
        %p193 = pneg %p36
        %p194 = pneg %p33
        %p195 = pneg %p57
        %p196 = pneg %p54
        %p197 = pneg %p78
        %p198 = pneg %p75
        %p199 = pneg %p104
        %p200 = pneg %p101
        %s201 = smul.u32 2, %s15
        %p202 = scmp.lt.s32.totalorder %s201, 7
        %s203 = scalar_select %p202, %s201, 7
        %s204 = scalar_lea.vmem %s3, %s203
        %s205 = smul.u32 2, %s15
        %s206 = smul.u32 2, %s15
        %p207 = scmp.lt.s32.totalorder %s206, 7
        %s208 = scalar_select %p207, %s206, 7
        %s209 = scalar_lea.vmem %s3, %s208
        %s210 = smul.u32 2, %s15
        %s211 = sld [smem:[#allocation3]]
        %s212 = sld [smem:[#allocation3 + $0x1]]
        %v213 = vld [vmem:[%s180] sm:$0xff]
        %v214 = vld [vmem:[%s180 + $0x8] sm:$0xff]
        %v215 = vld [vmem:[%s180 + $0x10] sm:$0x1]
        %v216 = vld [vmem:[%s180 + $0x18] sm:$0x1]
        %v217 = vstv %s211
        %v218 = vmul.f32 %v213, %v217
        %v219 = vmul.f32 %v214, %v217
        %v220 = vmul.f32 %v215, %v217
        %v221 = vmul.f32 %v216, %v217
        %v222 = vstv %s212
        %v223 = vadd.f32 %v218, %v222
        %v224 = vadd.f32 %v219, %v222
        %v225 = vadd.f32 %v220, %v222
        %v226 = vadd.f32 %v221, %v222
        %v227 = vmax.f32 %v223, 0.0
        %v228 = vmax.f32 %v224, 0.0
        %v229 = vmax.f32 %v225, 0.0
        %v230 = vmax.f32 %v226, 0.0
        %v231 = vld [vmem:[%s1] sm:$0x7]
        %233 = vset.pattern.permute.xlu0 9
        %234 = vperm.xlu0 %233, %v231
        %v235 = vpop.permute.xlu0 %234
        %vm237 = vcmask 72704
        %v238 = vsel %vm237, %v231, 0
        %vm240 = vcmask 1040384
        %v242 = vsel %vm240, %v229, 0
        %v245 = vsel %vm240, %v230, 0
        %247 = vmatprep.subr.mxu0 %v228
        %248 = vmatpush1.msra.mxu0 %v227
        %249 = vmatprep.subr.mxu0 %v245
        %250 = vmatpush1.msra.mxu0 %v242
        %251 = vmatprep.subr.mxu0 0.0
        %252 = vmatpush1.msra.mxu0 0.0
        %253 = vmatprep.subr.mxu0 0.0
        %254 = vmatpush1.msra.mxu0 0.0
        %255 = vmatprep.subr.mxu0 0.0
        %256 = vmatpush1.msra.mxu0 0.0
        %257 = vmatprep.subr.mxu0 0.0
        %258 = vmatpush1.msra.mxu0 0.0
        %259 = vmatprep.subr.mxu0 0.0
        %260 = vmatpush1.msra.mxu0 0.0
        %261 = vmatprep.subr.mxu0 0.0
        %262 = vmatpush1.msra.mxu0 0.0
        %263 = vmatprep.subr.mxu0 0.0
        %264 = vmatpush1.msra.mxu0 0.0
        %265 = vmatprep.subr.mxu0 0.0
        %266 = vmatpush1.msra.mxu0 0.0
        %267 = vmatprep.subr.mxu0 0.0
        %268 = vmatpush1.msra.mxu0 0.0
        %269 = vmatprep.subr.mxu0 0.0
        %270 = vmatpush1.msra.mxu0 0.0
        %271 = vmatprep.subr.mxu0 0.0
        %272 = vmatpush1.msra.mxu0 0.0
        %273 = vmatprep.subr.mxu0 0.0
        %274 = vmatpush1.msra.mxu0 0.0
        %275 = vmatprep.subr.mxu0 0.0
        %276 = vmatpush1.msra.mxu0 0.0
        %277 = vmatprep.subr.mxu0 0.0
        %278 = vmatpush1.msra.mxu0 0.0
        %279 = vmatprep.subr.mxu0 0.0
        %280 = vmatpush1.msra.mxu0 0.0
        %281 = vmatprep.subr.mxu0 0.0
        %282 = vmatpush1.msra.mxu0 0.0
        %283 = vmatprep.subr.mxu0 0.0
        %284 = vmatpush1.msra.mxu0 0.0
        %285 = vmatprep.subr.mxu0 0.0
        %286 = vmatpush1.msra.mxu0 0.0
        %287 = vmatprep.subr.mxu0 0.0
        %288 = vmatpush1.msra.mxu0 0.0
        %289 = vmatprep.subr.mxu0 0.0
        %290 = vmatpush1.msra.mxu0 0.0
        %291 = vmatprep.subr.mxu0 0.0
        %292 = vmatpush1.msra.mxu0 0.0
        %293 = vmatprep.subr.mxu0 0.0
        %294 = vmatpush1.msra.mxu0 0.0
        %295 = vmatprep.subr.mxu0 0.0
        %296 = vmatpush1.msra.mxu0 0.0
        %297 = vmatprep.subr.mxu0 0.0
        %298 = vmatpush1.msra.mxu0 0.0
        %299 = vmatprep.subr.mxu0 0.0
        %300 = vmatpush1.msra.mxu0 0.0
        %301 = vmatprep.subr.mxu0 0.0
        %302 = vmatpush1.msra.mxu0 0.0
        %303 = vmatprep.subr.mxu0 0.0
        %304 = vmatpush1.msra.mxu0 0.0
        %305 = vmatprep.subr.mxu0 0.0
        %306 = vmatpush1.msra.mxu0 0.0
        %307 = vmatprep.subr.mxu0 0.0
        %308 = vmatpush1.msra.mxu0 0.0
        %309 = vmatprep.subr.mxu0 0.0
        %310 = vmatpush1.msra.mxu0 0.0
        %311 = vmatprep.mubr.f32.mxu0 0.0
        %312 = vmatmul.mubr.f32.gmra.mrb[0].mxu0 %v238
        %v313 = vpop.f32.mrb[0].mxu0
        %v314 = vadd.f32 %v235, %v313
        %v315 = vpop.f32.mrb[0].mxu0
        %v316 = vadd.f32 %v235, %v315
        %317 = vdwg.mxu0
        %v318 = vmax.f32 %v314, 0.0
        %v319 = vmax.f32 %v316, 0.0
        %s320 = sld [smem:[#allocation3 + $0x2]]
        %v321 = vstv %s320
        %v322 = vmul.f32 %v321, %v318
        %v323 = vmul.f32 %v321, %v319
        %s324 = sld [smem:[#allocation3 + $0x3]]
        %v325 = vstv %s324
        %v326 = vmul.f32 %v325, %v318
        %v327 = vmul.f32 %v325, %v319
        %v330 = vrot.slane %v326, 1
        %v331 = vrot.slane %v327, 1
        %v334 = vadd.f32 %v322, %v330
        %v335 = vadd.f32 %v323, %v331
        %s336 = sld [smem:[#allocation3 + $0x4]]
        %v337 = vstv %s336
        %v338 = vmul.f32 %v337, %v318
        %v339 = vmul.f32 %v337, %v319
        %v342 = vrot.slane %v338, 2
        %v343 = vrot.slane %v339, 2
        %v346 = vadd.f32 %v334, %v342
        %v347 = vadd.f32 %v335, %v343
        %s348 = sld [smem:[#allocation3 + $0x5]]
        %v349 = vstv %s348
        %v350 = vadd.f32 %v346, %v349
        %v351 = vadd.f32 %v347, %v349
        %v352 = vtanh.pop %v350
        %v353 = vtanh.pop %v351
        %v356 = vcombine.low %v352, %v353
        %v358 = vunpack.c.l.s4 1966171168
        %v359 = vunpack.c.0.s8 %v358
        %v360 = vlaneseq
        %v361 = vshrl.u32 %v360, 7
        %v362 = vsub.s32 %v359, %v361
        %v363 = vrot.slane %v356, %v362
        %v365 = vunpack.c.l.s4 1966171168
        %v366 = vunpack.c.0.s8 %v365
        %v367 = vlaneseq
        %v368 = vshrl.u32 %v367, 7
        %v369 = vsub.s32 %v366, %v368
        %v370 = vrot.slane %v363, %v369
        %v372 = vlaneseq
        %vm373 = vcmp.ge.s32.totalorder %v372, 0
        %vm374 = vcmp.lt.s32.totalorder %v372, 256
        %vm375 = vmand %vm373, %vm374
        %376 = vst.msk [vmem:[%s209] sm:$0x3] %vm375, %v370
        %s377 = smul.u32 2, %s15
        %p378 = scmp.lt.s32.totalorder %s377, 7
        %s379 = scalar_select %p378, %s377, 7
        %s380 = scalar_lea.vmem %s3, %s379
        // Predicated region
        $region60: #{value_head_forward.3} parent=50 // pred_check
          %p381 = pneg %p101
        $region61: #{value_head_forward.3} parent=50 // pred_check_branch
          %383 = sbr.rel (%p381) target = $region63
        $region62: #{value_head_forward.3} parent=50 // pred_region
          %s384 = smul.u32 2, %s15
        $region63: #{value_head_forward.3} parent=50 // pred_fallthru
          _
      $region51: #{value_head_forward.3} parent=5 // pred_fallthru
        _
      %p385 = scmp.le.s32.totalorder 2, %s10
      // Predicated region
      $region64: #{value_head_forward.3} parent=5 // pred_check
        %p386 = pneg %p385
      $region65: #{value_head_forward.3} parent=5 // pred_check_branch
        %388 = sbr.rel (%p386) target = $region67
      $region66: #{value_head_forward.3} parent=5 // pred_region
        %s389 = ssub.s32 %s10, 2
        // Predicated region
        $region68: #{value_head_forward.3} parent=66 // pred_check
          %p390 = pneg %p107
        $region69: #{value_head_forward.3} parent=66 // pred_check_branch
          %392 = sbr.rel (%p390) target = $region71
        $region70: #{value_head_forward.3} parent=66 // pred_region
          %s393 = smul.u32 2, %s16
          %p394 = scmp.lt.s32.totalorder %s393, 7
          %s395 = scalar_select %p394, %s393, 7
          %s396 = scalar_lea.vmem %s3, %s395
        $region71: #{value_head_forward.3} parent=66 // pred_fallthru
          _
      $region67: #{value_head_forward.3} parent=5 // pred_fallthru
        _
    $region6: #{value_head_forward.3} parent=1 // loop_footer
      %s14 = sadd.s32 1, %s10
    $region7: #{value_head_forward.3} parent=1 // loop_footer_branch
      %9 = sbr.rel target = $region3
    $region8: #{value_head_forward.3} parent=1 // loop_exit
      _
    %397 = vsyncpa [#allocation4], 1
    %s398 = scalar_lea.sflag [#allocation4], 1
    %399 = vsyncpa %s398, 1

// kernel: value_head_forward.2
$region0: #{value_head_forward.2}
  #allocation0 [shape = 'u32[]', space=smem, size = 0x4, offset = 0x4, fixed_abs, tag = 'smem constant byte address 0x4 - core index']
  #allocation1 [shape = 'u32[144,128]{1,0:T(1,128)}', space=vmem, size = 0x12000, scoped, tag = 'internal scratch']
  %s0 = inlined_call_operand.vmem [shape: f32[1024,144], index: 0, kind: input, shape index: {}]
  %s1 = inlined_call_operand.vmem [shape: f32[9,144], index: 1, kind: input, shape index: {}]
  %s2 = inlined_call_operand.vmem [shape: f32[9,1024], index: 2, kind: output, shape index: {0}]
  %s3 = inlined_call_operand.vmem [shape: f32[4,1,2], index: 3, kind: output, shape index: {1}]
  %4 = xla_tuple %s2, %s3
  %s5 = sld [smem:[#allocation0]]
  $region68: #{value_head_forward.2} parent=0
    _
  %s7 = ssub.s32 1, %s5
  %s8 = scalar_select 0, %s7, %s5
  $region1: #{value_head_forward.2} parent=0
    #allocation2 [shape = 'u8[32768]{0}', space=vmem, size = 0x8000, scoped, tag = 'output window, operand 0']
    loop: start=0, step=1, limit=6
    $region2: #{value_head_forward.2} parent=1 // loop_pre_header
      _
    $region3: #{value_head_forward.2} parent=1 // loop_header
      %s10 = sphi 0, %s14
      %p11 = scmp.ge.s32.totalorder %s10, 6
      %s20 = sphi 0, %s22
      %s23 = sphi 0, %s20
      %s24 = sphi 0, %s23
      %s40 = sphi 0, %s24
      %s44 = sphi 0, %s44
      %s46 = sphi 0, %s44
      %s47 = sphi 0, %s46
      %s61 = sphi 0, %s47
      %s67 = sphi 0, %s69
      %s70 = sphi 0, %s67
      %s71 = sphi 0, %s70
      %s87 = sphi 0, %s71
      %s93 = sphi 0, %s95
      %s96 = sphi 0, %s93
      %s97 = sphi 0, %s96
      %s113 = sphi 0, %s97
    $region4: #{value_head_forward.2} parent=1 // loop_header_branch
      %13 = sbr.rel (%p11) target = $region8
    $region5: #{value_head_forward.2} parent=1 // loop_body
      %s15 = ssub.s32 %s10, 1
      %s16 = ssub.s32 %s10, 2
      %s17 = sadd.s32 %s10, 1
      %s18 = ssub.s32 %s10, %s17
      %p19 = scmp.eq.s32.totalorder %s18, 0
      %s21 = sadd.s32 %s20, 1
      %s22 = scalar_select %p19, %s20, %s21
      %p25 = pneg %p19
      %p26 = scmp.eq.s32.totalorder %s10, 3
      %p27 = por %p25, %p26
      %p28 = scmp.ne.s32.totalorder %s20, %s23
      %p29 = scmp.eq.s32.totalorder %s10, 0
      %p30 = por %p28, %p29
      %p31 = scmp.ne.s32.totalorder %s20, %s23
      %p32 = scmp.eq.s32.totalorder %s15, 3
      %p33 = por %p31, %p32
      %p34 = scmp.ne.s32.totalorder %s23, %s24
      %p35 = scmp.eq.s32.totalorder %s15, 0
      %p36 = por %p34, %p35
      %p37 = scmp.ne.s32.totalorder %s23, %s24
      %p38 = scmp.eq.s32.totalorder %s16, 3
      %p39 = por %p37, %p38
      %p41 = scmp.ne.s32.totalorder %s24, %s40
      %p42 = scmp.eq.s32.totalorder %s16, 0
      %p43 = por %p41, %p42
      %s45 = sadd.s32 %s44, 1
      %p48 = scmp.eq.s32.totalorder %s10, 3
      %p49 = scmp.ne.s32.totalorder %s44, %s46
      %p50 = scmp.eq.s32.totalorder %s10, 0
      %p51 = por %p49, %p50
      %p52 = scmp.ne.s32.totalorder %s44, %s46
      %p53 = scmp.eq.s32.totalorder %s15, 3
      %p54 = por %p52, %p53
      %p55 = scmp.ne.s32.totalorder %s46, %s47
      %p56 = scmp.eq.s32.totalorder %s15, 0
      %p57 = por %p55, %p56
      %p58 = scmp.ne.s32.totalorder %s46, %s47
      %p59 = scmp.eq.s32.totalorder %s16, 3
      %p60 = por %p58, %p59
      %p62 = scmp.ne.s32.totalorder %s47, %s61
      %p63 = scmp.eq.s32.totalorder %s16, 0
      %p64 = por %p62, %p63
      %s65 = ssub.s32 %s10, %s17
      %p66 = scmp.eq.s32.totalorder %s65, 0
      %s68 = sadd.s32 %s67, 1
      %s69 = scalar_select %p66, %s67, %s68
      %p72 = pneg %p66
      %p73 = scmp.eq.s32.totalorder %s10, 3
      %p74 = por %p72, %p73
      %p75 = scmp.ne.s32.totalorder %s67, %s70
      %p76 = scmp.eq.s32.totalorder %s10, 0
      %p77 = por %p75, %p76
      %p78 = scmp.ne.s32.totalorder %s67, %s70
      %p79 = scmp.eq.s32.totalorder %s15, 3
      %p80 = por %p78, %p79
      %p81 = scmp.ne.s32.totalorder %s70, %s71
      %p82 = scmp.eq.s32.totalorder %s15, 0
      %p83 = por %p81, %p82
      %p84 = scmp.ne.s32.totalorder %s70, %s71
      %p85 = scmp.eq.s32.totalorder %s16, 3
      %p86 = por %p84, %p85
      %p88 = scmp.ne.s32.totalorder %s71, %s87
      %p89 = scmp.eq.s32.totalorder %s16, 0
      %p90 = por %p88, %p89
      %s91 = ssub.s32 %s10, %s17
      %p92 = scmp.eq.s32.totalorder %s91, 0
      %s94 = sadd.s32 %s93, 1
      %s95 = scalar_select %p92, %s93, %s94
      %p98 = pneg %p92
      %p99 = scmp.eq.s32.totalorder %s10, 3
      %p100 = por %p98, %p99
      %p101 = scmp.ne.s32.totalorder %s93, %s96
      %p102 = scmp.eq.s32.totalorder %s10, 0
      %p103 = por %p101, %p102
      %p104 = scmp.ne.s32.totalorder %s93, %s96
      %p105 = scmp.eq.s32.totalorder %s15, 3
      %p106 = por %p104, %p105
      %p107 = scmp.ne.s32.totalorder %s96, %s97
      %p108 = scmp.eq.s32.totalorder %s15, 0
      %p109 = por %p107, %p108
      %p110 = scmp.ne.s32.totalorder %s96, %s97
      %p111 = scmp.eq.s32.totalorder %s16, 3
      %p112 = por %p110, %p111
      %p114 = scmp.ne.s32.totalorder %s97, %s113
      %p115 = scmp.eq.s32.totalorder %s16, 0
      %p116 = por %p114, %p115
      %p117 = scmp.le.s32.totalorder 1, %s10
      %p118 = scmp.lt.s32.totalorder %s10, 5
      %p119 = pnand %p117, %p118
      %p120 = pneg %p119
      // Predicated region
      $region9: #{value_head_forward.2} parent=5 // pred_check
        _
      $region10: #{value_head_forward.2} parent=5 // pred_check_branch
        %122 = sbr.rel (%p119) target = $region12
      $region11: #{value_head_forward.2} parent=5 // pred_region
        %s123 = ssub.s32 %s10, 1
        // Predicated region
        $region13: #{value_head_forward.2} parent=11 // pred_check
          %p124 = pneg %p57
        $region14: #{value_head_forward.2} parent=11 // pred_check_branch
          %126 = sbr.rel (%p124) target = $region16
        $region15: #{value_head_forward.2} parent=11 // pred_region
          _
        $region16: #{value_head_forward.2} parent=11 // pred_fallthru
          _
      $region12: #{value_head_forward.2} parent=5 // pred_fallthru
        _
      %p127 = scmp.lt.s32.totalorder %s10, 4
      // Predicated region
      $region17: #{value_head_forward.2} parent=5 // pred_check
        %p128 = pneg %p127
      $region18: #{value_head_forward.2} parent=5 // pred_check_branch
        %130 = sbr.rel (%p128) target = $region20
      $region19: #{value_head_forward.2} parent=5 // pred_region
        // Predicated region
        $region21: #{value_head_forward.2} parent=19 // pred_check
          %p131 = pneg %p30
        $region22: #{value_head_forward.2} parent=19 // pred_check_branch
          %133 = sbr.rel (%p131) target = $region24
        $region23: #{value_head_forward.2} parent=19 // pred_region
          %s134 = smul.u32 32, %s10
          %p135 = scmp.lt.s32.totalorder %s134, 127
          %s136 = scalar_select %p135, %s134, 127
          %s137 = smul.addr %s136, 2
          %s138 = smul.addr %s137, 8
          %s139 = scalar_lea.vmem %s0, %s138
          %s140 = smul.u32 32, %s10
        $region24: #{value_head_forward.2} parent=19 // pred_fallthru
          _
      $region20: #{value_head_forward.2} parent=5 // pred_fallthru
        _
      %p141 = scmp.le.s32.totalorder 1, %s10
      %p142 = scmp.lt.s32.totalorder %s10, 5
      %p143 = pnand %p141, %p142
      %p144 = pneg %p143
      // Predicated region
      $region25: #{value_head_forward.2} parent=5 // pred_check
        _
      $region26: #{value_head_forward.2} parent=5 // pred_check_branch
        %146 = sbr.rel (%p143) target = $region28
      $region27: #{value_head_forward.2} parent=5 // pred_region
        %s147 = ssub.s32 %s10, 1
        %s148 = smul.u32 32, %s15
        %p149 = scmp.lt.s32.totalorder %s148, 127
        %s150 = scalar_select %p149, %s148, 127
        %s151 = smul.addr %s150, 2
        %s152 = smul.addr %s151, 8
        %s153 = scalar_lea.vmem %s0, %s152
        %p154 = pneg %p36
        %p155 = pneg %p33
        %p156 = pneg %p57
        %p157 = pneg %p54
        %p158 = pneg %p83
        %p159 = pneg %p80
        %s160 = sand.u32 %s70, 1
        %s161 = sand.u32 %s70, 1
        %s162 = smul.addr %s161, 32
        %s163 = scalar_lea.vmem [#allocation2], %s162
        %p164 = pneg %p109
        %p165 = pneg %p106
        %p166 = scmp.lt.s32.totalorder %s15, 3
        %s167 = scalar_select %p166, %s15, 3
        %s168 = scalar_lea.vmem %s3, %s167
        %s169 = smul.u32 32, %s15
        %p170 = scmp.lt.s32.totalorder %s169, 127
        %s171 = scalar_select %p170, %s169, 127
        %s172 = smul.addr %s171, 2
        %s173 = smul.addr %s172, 8
        %s174 = scalar_lea.vmem %s0, %s173
        %s175 = smul.u32 32, %s15
        %s176 = smul.u32 2, %s15
        %p177 = scmp.lt.s32.totalorder %s15, 3
        %s178 = scalar_select %p177, %s15, 3
        %s179 = scalar_lea.vmem %s3, %s178
        %v180 = vld [vmem:[%s1] sm:$0xff]
        %v181 = vld [vmem:[%s1 + $0x8] sm:$0xff]
        %v182 = vld [vmem:[%s1 + $0x10] sm:$0x1]
        %v183 = vld [vmem:[%s1 + $0x18] sm:$0x1]
        %v184 = vld [vmem:[%s174] sm:$0xff]
        %v185 = vld [vmem:[%s174 + $0x8] sm:$0xff]
        %v186 = vld [vmem:[%s174 + $0x10] sm:$0xff]
        %v187 = vld [vmem:[%s174 + $0x18] sm:$0xff]
        %v188 = vld [vmem:[%s174 + $0x20] sm:$0xff]
        %v189 = vld [vmem:[%s174 + $0x28] sm:$0xff]
        %v190 = vld [vmem:[%s174 + $0x30] sm:$0xff]
        %v191 = vld [vmem:[%s174 + $0x38] sm:$0xff]
        %v192 = vld [vmem:[%s174 + $0x40] sm:$0xff]
        %v193 = vld [vmem:[%s174 + $0x48] sm:$0xff]
        %v194 = vld [vmem:[%s174 + $0x50] sm:$0xff]
        %v195 = vld [vmem:[%s174 + $0x58] sm:$0xff]
        %v196 = vld [vmem:[%s174 + $0x60] sm:$0xff]
        %v197 = vld [vmem:[%s174 + $0x68] sm:$0xff]
        %v198 = vld [vmem:[%s174 + $0x70] sm:$0xff]
        %v199 = vld [vmem:[%s174 + $0x78] sm:$0xff]
        %v200 = vld [vmem:[%s174 + $0x80] sm:$0xff]
        %v201 = vld [vmem:[%s174 + $0x88] sm:$0xff]
        %v202 = vld [vmem:[%s174 + $0x90] sm:$0xff]
        %v203 = vld [vmem:[%s174 + $0x98] sm:$0xff]
        %v204 = vld [vmem:[%s174 + $0xa0] sm:$0xff]
        %v205 = vld [vmem:[%s174 + $0xa8] sm:$0xff]
        %v206 = vld [vmem:[%s174 + $0xb0] sm:$0xff]
        %v207 = vld [vmem:[%s174 + $0xb8] sm:$0xff]
        %v208 = vld [vmem:[%s174 + $0xc0] sm:$0xff]
        %v209 = vld [vmem:[%s174 + $0xc8] sm:$0xff]
        %v210 = vld [vmem:[%s174 + $0xd0] sm:$0xff]
        %v211 = vld [vmem:[%s174 + $0xd8] sm:$0xff]
        %v212 = vld [vmem:[%s174 + $0xe0] sm:$0xff]
        %v213 = vld [vmem:[%s174 + $0xe8] sm:$0xff]
        %v214 = vld [vmem:[%s174 + $0xf0] sm:$0xff]
        %v215 = vld [vmem:[%s174 + $0xf8] sm:$0xff]
        %v216 = vld [vmem:[%s174 + $0x100] sm:$0xff]
        %v217 = vld [vmem:[%s174 + $0x108] sm:$0xff]
        %v218 = vld [vmem:[%s174 + $0x110] sm:$0xff]
        %v219 = vld [vmem:[%s174 + $0x118] sm:$0xff]
        %v220 = vld [vmem:[%s174 + $0x120] sm:$0xff]
        %v221 = vld [vmem:[%s174 + $0x128] sm:$0xff]
        %v222 = vld [vmem:[%s174 + $0x130] sm:$0xff]
        %v223 = vld [vmem:[%s174 + $0x138] sm:$0xff]
        %v224 = vld [vmem:[%s174 + $0x140] sm:$0xff]
        %v225 = vld [vmem:[%s174 + $0x148] sm:$0xff]
        %v226 = vld [vmem:[%s174 + $0x150] sm:$0xff]
        %v227 = vld [vmem:[%s174 + $0x158] sm:$0xff]
        %v228 = vld [vmem:[%s174 + $0x160] sm:$0xff]
        %v229 = vld [vmem:[%s174 + $0x168] sm:$0xff]
        %v230 = vld [vmem:[%s174 + $0x170] sm:$0xff]
        %v231 = vld [vmem:[%s174 + $0x178] sm:$0xff]
        %v232 = vld [vmem:[%s174 + $0x180] sm:$0xff]
        %v233 = vld [vmem:[%s174 + $0x188] sm:$0xff]
        %v234 = vld [vmem:[%s174 + $0x190] sm:$0xff]
        %v235 = vld [vmem:[%s174 + $0x198] sm:$0xff]
        %v236 = vld [vmem:[%s174 + $0x1a0] sm:$0xff]
        %v237 = vld [vmem:[%s174 + $0x1a8] sm:$0xff]
        %v238 = vld [vmem:[%s174 + $0x1b0] sm:$0xff]
        %v239 = vld [vmem:[%s174 + $0x1b8] sm:$0xff]
        %v240 = vld [vmem:[%s174 + $0x1c0] sm:$0xff]
        %v241 = vld [vmem:[%s174 + $0x1c8] sm:$0xff]
        %v242 = vld [vmem:[%s174 + $0x1d0] sm:$0xff]
        %v243 = vld [vmem:[%s174 + $0x1d8] sm:$0xff]
        %v244 = vld [vmem:[%s174 + $0x1e0] sm:$0xff]
        %v245 = vld [vmem:[%s174 + $0x1e8] sm:$0xff]
        %v246 = vld [vmem:[%s174 + $0x1f0] sm:$0xff]
        %v247 = vld [vmem:[%s174 + $0x1f8] sm:$0xff]
        %vm248 = vcmask 130048
        %v250 = vsel %vm248, %v181, 0
        %v253 = vsel %vm248, %v183, 0
        %v256 = vsel %vm248, %v185, 0
        %v259 = vsel %vm248, %v187, 0
        %v262 = vsel %vm248, %v189, 0
        %v265 = vsel %vm248, %v191, 0
        %v268 = vsel %vm248, %v193, 0
        %v271 = vsel %vm248, %v195, 0
        %v274 = vsel %vm248, %v197, 0
        %v277 = vsel %vm248, %v199, 0
        %v280 = vsel %vm248, %v201, 0
        %v283 = vsel %vm248, %v203, 0
        %v286 = vsel %vm248, %v205, 0
        %v289 = vsel %vm248, %v207, 0
        %v292 = vsel %vm248, %v209, 0
        %v295 = vsel %vm248, %v211, 0
        %v298 = vsel %vm248, %v213, 0
        %v301 = vsel %vm248, %v215, 0
        %v304 = vsel %vm248, %v217, 0
        %v307 = vsel %vm248, %v219, 0
        %v310 = vsel %vm248, %v221, 0
        %v313 = vsel %vm248, %v223, 0
        %v316 = vsel %vm248, %v225, 0
        %v319 = vsel %vm248, %v227, 0
        %v322 = vsel %vm248, %v229, 0
        %v325 = vsel %vm248, %v231, 0
        %v328 = vsel %vm248, %v233, 0
        %v331 = vsel %vm248, %v235, 0
        %v334 = vsel %vm248, %v237, 0
        %v337 = vsel %vm248, %v239, 0
        %v340 = vsel %vm248, %v241, 0
        %v343 = vsel %vm248, %v243, 0
        %v346 = vsel %vm248, %v245, 0
        %v349 = vsel %vm248, %v247, 0
        %351 = vmatprep.subr.mxu0 %v256
        %352 = vmatpush1.xpose.msra.mxu0 %v184
        %353 = vmatprep.subr.mxu0 %v259
        %354 = vmatpush1.xpose.msra.mxu0 %v186
        %355 = vmatprep.subr.mxu0 %v262
        %356 = vmatpush1.xpose.msra.mxu0 %v188
        %357 = vmatprep.subr.mxu0 %v265
        %358 = vmatpush1.xpose.msra.mxu0 %v190
        %359 = vmatprep.subr.mxu0 %v268
        %360 = vmatpush1.xpose.msra.mxu0 %v192
        %361 = vmatprep.subr.mxu0 %v271
        %362 = vmatpush1.xpose.msra.mxu0 %v194
        %363 = vmatprep.subr.mxu0 %v274
        %364 = vmatpush1.xpose.msra.mxu0 %v196
        %365 = vmatprep.subr.mxu0 %v277
        %366 = vmatpush1.xpose.msra.mxu0 %v198
        %367 = vmatprep.subr.mxu0 %v280
        %368 = vmatpush1.xpose.msra.mxu0 %v200
        %369 = vmatprep.subr.mxu0 %v283
        %370 = vmatpush1.xpose.msra.mxu0 %v202
        %371 = vmatprep.subr.mxu0 %v286
        %372 = vmatpush1.xpose.msra.mxu0 %v204
        %373 = vmatprep.subr.mxu0 %v289
        %374 = vmatpush1.xpose.msra.mxu0 %v206
        %375 = vmatprep.subr.mxu0 %v292
        %376 = vmatpush1.xpose.msra.mxu0 %v208
        %377 = vmatprep.subr.mxu0 %v295
        %378 = vmatpush1.xpose.msra.mxu0 %v210
        %379 = vmatprep.subr.mxu0 %v298
        %380 = vmatpush1.xpose.msra.mxu0 %v212
        %381 = vmatprep.subr.mxu0 %v301
        %382 = vmatpush1.xpose.msra.mxu0 %v214
        %383 = vmatprep.subr.mxu0 %v304
        %384 = vmatpush1.xpose.msra.mxu0 %v216
        %385 = vmatprep.subr.mxu0 %v307
        %386 = vmatpush1.xpose.msra.mxu0 %v218
        %387 = vmatprep.subr.mxu0 %v310
        %388 = vmatpush1.xpose.msra.mxu0 %v220
        %389 = vmatprep.subr.mxu0 %v313
        %390 = vmatpush1.xpose.msra.mxu0 %v222
        %391 = vmatprep.subr.mxu0 %v316
        %392 = vmatpush1.xpose.msra.mxu0 %v224
        %393 = vmatprep.subr.mxu0 %v319
        %394 = vmatpush1.xpose.msra.mxu0 %v226
        %395 = vmatprep.subr.mxu0 %v322
        %396 = vmatpush1.xpose.msra.mxu0 %v228
        %397 = vmatprep.subr.mxu0 %v325
        %398 = vmatpush1.xpose.msra.mxu0 %v230
        %399 = vmatprep.subr.mxu0 %v328
        %400 = vmatpush1.xpose.msra.mxu0 %v232
        %401 = vmatprep.subr.mxu0 %v331
        %402 = vmatpush1.xpose.msra.mxu0 %v234
        %403 = vmatprep.subr.mxu0 %v334
        %404 = vmatpush1.xpose.msra.mxu0 %v236
        %405 = vmatprep.subr.mxu0 %v337
        %406 = vmatpush1.xpose.msra.mxu0 %v238
        %407 = vmatprep.subr.mxu0 %v340
        %408 = vmatpush1.xpose.msra.mxu0 %v240
        %409 = vmatprep.subr.mxu0 %v343
        %410 = vmatpush1.xpose.msra.mxu0 %v242
        %411 = vmatprep.subr.mxu0 %v346
        %412 = vmatpush1.xpose.msra.mxu0 %v244
        %413 = vmatprep.subr.mxu0 %v349
        %414 = vmatpush1.xpose.msra.mxu0 %v246
        %415 = vmatprep.mubr.f32.mxu0 %v250
        %416 = vmatmul.mubr.f32.gmra.mrb[0].mxu0 %v180
        %v417 = vpop.f32.mrb[0].mxu0
        %v418 = vadd.f32 0.0, %v417
        %v419 = vpop.f32.mrb[0].mxu0
        %v420 = vadd.f32 0.0, %v419
        %421 = vmatprep.mubr.f32.mxu0 %v253
        %422 = vmatmul.mubr.f32.gmra.mrb[0].mxu0 %v182
        %v423 = vpop.f32.mrb[0].mxu0
        %v424 = vadd.f32 0.0, %v423
        %v425 = vpop.f32.mrb[0].mxu0
        %v426 = vadd.f32 0.0, %v425
        %427 = vdwg.mxu0
        %v428 = vadd.f32 %v418, %v420
        %vm429 = vcmask 1040384
        %v430 = vsel %vm429, %v424, 0.0
        %v431 = vadd.f32 %v428, %v430
        %v432 = vsel %vm429, %v426, 0.0
        %v433 = vadd.f32 %v431, %v432
        %434 = vadd.xlane.f32.xlu0 %v433
        %v435 = vpop.xlane.xlu0 %434
        %v436 = vrot.slane %v435, 4
        %v437 = vadd.f32 %v435, %v436
        %v438 = vrot.slane %v437, 2
        %v439 = vadd.f32 %v437, %v438
        %v440 = vrot.slane %v439, 1
        %v441 = vadd.f32 %v439, %v440
        %s442 = vtos %v441
        %v443 = vstv %s442
        %vm444 = vcmask 0
        %445 = vst.msk [vmem:[%s179] sm:$0x1] %vm444, %v443
        %v446 = vmul.f32 %v418, %v418
        %v447 = vmul.f32 %v420, %v420
        %v448 = vmul.f32 %v424, %v424
        %v449 = vmul.f32 %v426, %v426
        %v450 = vadd.f32 %v446, %v447
        %v451 = vsel %vm429, %v448, 0.0
        %v452 = vadd.f32 %v450, %v451
        %v453 = vsel %vm429, %v449, 0.0
        %v454 = vadd.f32 %v452, %v453
        %455 = vadd.xlane.f32.xlu0 %v454
        %v456 = vpop.xlane.xlu0 %455
        %v457 = vrot.slane %v456, 4
        %v458 = vadd.f32 %v456, %v457
        %v459 = vrot.slane %v458, 2
        %v460 = vadd.f32 %v458, %v459
        %v461 = vrot.slane %v460, 1
        %v462 = vadd.f32 %v460, %v461
        %s463 = vtos %v462
        %v464 = vstv %s463
        %vm465 = vcmask 8200
        %466 = vst.msk [vmem:[%s179] sm:$0x1] %vm465, %v464
        %467 = vst [vmem:[%s163] sm:$0xff] %v418
        %468 = vst [vmem:[%s163 + $0x8] sm:$0xff] %v420
        %469 = vst [vmem:[%s163 + $0x10] sm:$0x1] %v424
        %470 = vst [vmem:[%s163 + $0x18] sm:$0x1] %v426
        %s471 = sand.u32 %s70, 1
        %s472 = sand.u32 %s70, 1
        %s473 = smul.addr %s472, 32
        %s474 = scalar_lea.vmem [#allocation2], %s473
        %p475 = scmp.lt.s32.totalorder %s15, 3
        %s476 = scalar_select %p475, %s15, 3
        %s477 = scalar_lea.vmem %s3, %s476
        // Predicated region
        $region29: #{value_head_forward.2} parent=27 // pred_check
          %p478 = pneg %p80
        $region30: #{value_head_forward.2} parent=27 // pred_check_branch
          %480 = sbr.rel (%p478) target = $region32
        $region31: #{value_head_forward.2} parent=27 // pred_region
          %s481 = smul.u32 2, %s15
          %s482 = smul.addr %s481, 8
          %s483 = scalar_lea.vmem %s2, %s482
          // Predicated region
          $region33: #{value_head_forward.2} parent=31 // pred_check
            _
          $region34: #{value_head_forward.2} parent=31 // pred_check_branch
            %485 = sbr.rel (0) target = $region36
          $region35: #{value_head_forward.2} parent=31 // pred_region
            // Predicated region
            $region37: #{value_head_forward.2} parent=35 // pred_check
              _
            $region38: #{value_head_forward.2} parent=35 // pred_check_branch
              %487 = sbr.rel (0) target = $region40
            $region39: #{value_head_forward.2} parent=35 // pred_region
              loop: start=0, step=1, limit=1
              $region41: #{value_head_forward.2} parent=39 // loop_pre_header
                _
              $region42: #{value_head_forward.2} parent=39 // loop_header
                %s489 = sphi 0, %s493
                %p490 = scmp.ge.s32.totalorder %s489, 1
                %s494 = sphi %s474, %s474
                %s495 = sphi %s483, %s483
              $region43: #{value_head_forward.2} parent=39 // loop_header_branch
                %492 = sbr.rel (%p490) target = $region47
              $region44: #{value_head_forward.2} parent=39 // loop_body
                %v496 = vld [vmem:[%s494] sm:$0xff]
                %497 = vst [vmem:[%s495] sm:$0xff] %v496
                %v498 = vld [vmem:[%s494 + $0x8] sm:$0xff]
                %499 = vst [vmem:[%s495 + $0x8] sm:$0xff] %v498
                %v500 = vld [vmem:[%s494 + $0x10] sm:$0xff]
                %501 = vst [vmem:[%s495 + $0x40] sm:$0xff] %v500
                %v502 = vld [vmem:[%s494 + $0x18] sm:$0xff]
                %503 = vst [vmem:[%s495 + $0x48] sm:$0xff] %v502
              $region45: #{value_head_forward.2} parent=39 // loop_footer
                %s493 = sadd.s32 1, %s489
              $region46: #{value_head_forward.2} parent=39 // loop_footer_branch
                %488 = sbr.rel target = $region42
              $region47: #{value_head_forward.2} parent=39 // loop_exit
                _
            $region40: #{value_head_forward.2} parent=35 // pred_fallthru
              _
            // Predicated region
            $region48: #{value_head_forward.2} parent=35 // pred_check
              _
            $region49: #{value_head_forward.2} parent=35 // pred_check_branch
              %505 = sbr.rel target = $region51
            $region50: #{value_head_forward.2} parent=35 // pred_region
              _
            $region51: #{value_head_forward.2} parent=35 // pred_fallthru
              _
          $region36: #{value_head_forward.2} parent=31 // pred_fallthru
            _
          %506 = vnop
        $region32: #{value_head_forward.2} parent=27 // pred_fallthru
          _
        // Predicated region
        $region52: #{value_head_forward.2} parent=27 // pred_check
          %p507 = pneg %p106
        $region53: #{value_head_forward.2} parent=27 // pred_check_branch
          %509 = sbr.rel (%p507) target = $region55
        $region54: #{value_head_forward.2} parent=27 // pred_region
          _
        $region55: #{value_head_forward.2} parent=27 // pred_fallthru
          _
      $region28: #{value_head_forward.2} parent=5 // pred_fallthru
        _
      %p510 = scmp.le.s32.totalorder 2, %s10
      // Predicated region
      $region56: #{value_head_forward.2} parent=5 // pred_check
        %p511 = pneg %p510
      $region57: #{value_head_forward.2} parent=5 // pred_check_branch
        %513 = sbr.rel (%p511) target = $region59
      $region58: #{value_head_forward.2} parent=5 // pred_region
        %s514 = ssub.s32 %s10, 2
        // Predicated region
        $region60: #{value_head_forward.2} parent=58 // pred_check
          %p515 = pneg %p86
        $region61: #{value_head_forward.2} parent=58 // pred_check_branch
          %517 = sbr.rel (%p515) target = $region63
        $region62: #{value_head_forward.2} parent=58 // pred_region
          %s518 = sand.u32 %s71, 1
          %s519 = sand.u32 %s71, 1
          %s520 = smul.addr %s519, 32
          %s521 = scalar_lea.vmem [#allocation2], %s520
        $region63: #{value_head_forward.2} parent=58 // pred_fallthru
          _
        // Predicated region
        $region64: #{value_head_forward.2} parent=58 // pred_check
          %p522 = pneg %p112
        $region65: #{value_head_forward.2} parent=58 // pred_check_branch
          %524 = sbr.rel (%p522) target = $region67
        $region66: #{value_head_forward.2} parent=58 // pred_region
          %p525 = scmp.lt.s32.totalorder %s16, 3
          %s526 = scalar_select %p525, %s16, 3
          %s527 = scalar_lea.vmem %s3, %s526
        $region67: #{value_head_forward.2} parent=58 // pred_fallthru
          _
      $region59: #{value_head_forward.2} parent=5 // pred_fallthru
        _
    $region6: #{value_head_forward.2} parent=1 // loop_footer
      %s14 = sadd.s32 1, %s10
    $region7: #{value_head_forward.2} parent=1 // loop_footer_branch
      %9 = sbr.rel target = $region3
    $region8: #{value_head_forward.2} parent=1 // loop_exit
      _

</llo_original>
